<compile_context>
chip_gen: v7x
topology: tpu7x:2x2x1
jax: 0.10.0
libtpu: 0.0.40
codegen_flags: <defaults>
</compile_context>

<pallas_src>
import functools

import jax
import jax.numpy as jnp
from jax.experimental import pallas as pl
from jax.experimental.pallas import tpu as pltpu

_LANE = 128
_SUBLANE = 8
_MIN_PALLAS_BYTES = 128 * 1024   # per-modality bytes below which plain XLA wins


# ----------------------------------------------------------------------------
# FFN head (tiny) -> per-modality weights [B, M].  Deliberately left to XLA.
# ----------------------------------------------------------------------------
def _ffn_weights(q_condition, w1, b1, w2, b2):
    B = q_condition.shape[0]
    q_flat = q_condition.reshape(B, -1).astype(jnp.float32)      # [B, Q*D]
    h = jnp.maximum(q_flat @ w1 + b1, 0.0)                        # ReLU
    logits = h @ w2 + b2
    return jax.nn.softmax(logits, axis=-1)                        # [B, M]


# ----------------------------------------------------------------------------
# Fusion kernel: out[b, r, :] = sum_m w[b*M + m] * mod_m[b, r, :]
#   - weights live in SMEM as a flat [B*M] f32 vector
#   - each modality is its own VMEM-tiled input (no stacked copy)
# ----------------------------------------------------------------------------
def _make_fusion_kernel(num_modalities):
    def kernel(w_ref, *refs):
        mod_refs = refs[:num_modalities]
        out_ref = refs[num_modalities]
        base = pl.program_id(0) * num_modalities
        acc = mod_refs[0][...].astype(jnp.float32) * w_ref[base]
        for m in range(1, num_modalities):                        # M tiny & static
            acc = acc + mod_refs[m][...].astype(jnp.float32) * w_ref[base + m]
        out_ref[...] = acc.astype(out_ref.dtype)
    return kernel


def _pick_tile_rows(rows, batch, num_modalities, itemsize, *,
                    cap_rows=1024, min_steps=4,
                    vmem_data_budget=16 * 1024 * 1024):
    """Pick the sublane-row tile size.  `rows` is a multiple of 8 (guaranteed
    by the 8*128 padding).  The tile:
      (a) is a multiple of 8 (never violates the (8,128) lowering rule),
      (b) caps at ~1k rows; the VMEM budget counts the f32 upcast (max(it,4)),
      (c) shrinks until batch * num_tiles >= min_steps so the pipeline has
          steps to overlap and both v7x TensorCores get parallel work,
      (d) prefers a divisor of `rows` to avoid masked edge blocks.
    """
    eff = max(itemsize, 4)  # account for the in-kernel f32 upcast/accumulator
    budget_rows = vmem_data_budget // (2 * (num_modalities + 1) * _LANE * eff)
    cap = max(_SUBLANE, min(cap_rows, budget_rows - budget_rows % _SUBLANE))
    tile = max(_SUBLANE, min(rows, cap) - (min(rows, cap) % _SUBLANE))
    while tile > _SUBLANE and batch * (-(-rows // tile)) < min_steps:
        half = tile // 2
        tile = max(_SUBLANE, half - half % _SUBLANE)
    # Prefer an exact divisor of `rows` close to the chosen tile (no masked
    # edge block); otherwise keep `tile` (multiple of 8 + cdiv grid is legal).
    for t in range(tile, max(_SUBLANE - 1, tile // 2), -_SUBLANE):
        if rows % t == 0:
            return t
    return tile


def fuse_level(mod_list, weights):
    """mod_list: list of M arrays [B, C, H, W]; weights: [B, M] f32.
    Returns the fused [B, C, H, W]."""
    M = len(mod_list)
    B, C, H, W = mod_list[0].shape
    N = C * H * W
    dtype = mod_list[0].dtype
    itemsize = jnp.dtype(dtype).itemsize

    # Tiny level: a standalone pallas_call costs more than the compute;
    # XLA fuses this weighted sum at roofline.
    if B * N * itemsize < _MIN_PALLAS_BYTES:
        acc = weights[:, 0, None, None, None] * mod_list[0].astype(jnp.float32)
        for m in range(1, M):
            acc = acc + weights[:, m, None, None, None] * mod_list[m].astype(jnp.float32)
        return acc.astype(dtype)

    # Lane/sublane-dense layout: pad flattened C*H*W to a multiple of 8*128 and
    # view as [B, rows, 128].  (For non-divisible shapes the pad costs one
    # extra read+write per modality but avoids masked partial stores and keeps
    # the VMEM budget honest.)
    pad_n = (-N) % (_SUBLANE * _LANE)
    Np = N + pad_n
    rows = Np // _LANE

    def to_dense(x):
        x = x.reshape(B, N)
        if pad_n:
            x = jnp.pad(x, ((0, 0), (0, pad_n)))
        return x.reshape(B, rows, _LANE)

    mods = [to_dense(m) for m in mod_list]
    w_flat = weights.reshape(-1).astype(jnp.float32)              # [B*M] for SMEM

    tile_rows = _pick_tile_rows(rows, B, M, itemsize)
    num_tiles = -(-rows // tile_rows)

    # TODO(synk): on v7x, if xprof shows exposed input DMA at these tile sizes,
    # add pipeline_mode=pl.Buffered(3) to the modality BlockSpecs.
    blk_spec = pl.BlockSpec((None, tile_rows, _LANE), lambda b, t: (b, t, 0))
    fused = pl.pallas_call(
        _make_fusion_kernel(M),
        out_shape=jax.ShapeDtypeStruct((B, rows, _LANE), dtype),
        grid=(B, num_tiles),
        in_specs=[pl.BlockSpec(memory_space=pltpu.SMEM)] + [blk_spec] * M,
        out_specs=pl.BlockSpec((None, tile_rows, _LANE), lambda b, t: (b, t, 0)),
        compiler_params=pltpu.CompilerParams(
            dimension_semantics=("parallel", "parallel"),
        ),
    )(w_flat, *mods)

    fused = fused.reshape(B, Np)
    if pad_n:
        fused = fused[:, :N]
    return fused.reshape(B, C, H, W)


# ----------------------------------------------------------------------------
# Full forward (jitted: all per-level pallas_calls dispatch from one program)
# ----------------------------------------------------------------------------
@functools.partial(jax.jit,
                   static_argnames=("modalities", "fusion_levels",
                                    "main_modality"))
def qga_forward(params, features, q_condition, *, modalities, fusion_levels,
                main_modality):
    weights = _ffn_weights(q_condition, params["w1"], params["b1"],
                           params["w2"], params["b2"])             # [B, M]
    fused_features = {}
    for level, modality_features in features.items():
        if level in fusion_levels:
            fused_features[level] = fuse_level(
                [modality_features[m] for m in modalities], weights)
        else:
            fused_features[level] = modality_features[main_modality]
    return fused_features


class QueryGuidedAdditionFusionPallas:
    def __init__(self, modalities, fusion_levels, input_dim, input_queries,
                 key):
        self.modalities = tuple(modalities)
        self.fusion_levels = tuple(fusion_levels)
        self.main_modality = self.modalities[0]
        M = len(self.modalities)
        QD = input_dim * input_queries

        k1, k2 = jax.random.split(key)
        # Linear(QD -> D): deterministic random init (stands in for PyTorch's).
        w1 = jax.random.normal(k1, (QD, input_dim), jnp.float32) * (QD ** -0.5)
        b1 = jax.random.normal(k2, (1, input_dim), jnp.float32) * 0.01
        # Linear(D -> M): _initialize_weights() => weight = 0, bias = one-hot
        # on the main modality.
        w2 = jnp.zeros((input_dim, M), jnp.float32)
        b2 = jnp.zeros((1, M), jnp.float32).at[
            0, self.modalities.index(self.main_modality)].set(1.0)
        self.params = {"w1": w1, "b1": b1, "w2": w2, "b2": b2}

    def __call__(self, features, q_condition):
        return qga_forward(self.params, features, q_condition,
                           modalities=self.modalities,
                           fusion_levels=self.fusion_levels,
                           main_modality=self.main_modality)


# ----------------------------------------------------------------------------
# Pure-JAX reference for verification
# ----------------------------------------------------------------------------
def reference_forward(params, features, q_condition, modalities, fusion_levels,
                      main_modality):
    B = q_condition.shape[0]
    q_flat = q_condition.reshape(B, -1)
    h = jnp.maximum(q_flat @ params["w1"] + params["b1"], 0.0)
    weights = jax.nn.softmax(h @ params["w2"] + params["b2"], axis=-1)
    fused = {}
    for level, mf in features.items():
        if level in fusion_levels:
            stacked = jnp.stack([mf[m] for m in modalities], axis=1)
            fused[level] = (stacked * weights[:, :, None, None, None]).sum(axis=1)
        else:
            fused[level] = mf[main_modality]
    return fused


if __name__ == "__main__":
    key = jax.random.PRNGKey(0)

    modalities = ("CAMERA", "LIDAR")            # main modality = CAMERA
    fusion_levels = ("res2", "res3", "res4")    # res5 is NOT fused (pass-through)
    B = 2
    input_dim = 32                              # TRANSFORMER.HIDDEN_DIM
    input_queries = 8                           # N_CTX + condition entries

    # Level shapes chosen to exercise every code path:
    #   res2: 128-divisible spatial extent  -> Pallas, no padding
    #   res3: non-128-divisible (24*37*37)  -> Pallas with 8x128 padding
    #   res4: tiny                           -> plain-XLA weighted sum
    #   res5: not a fusion level             -> main-modality pass-through
    level_shapes = {
        "res2": (B, 32, 32, 32),
        "res3": (B, 24, 37, 37),
        "res4": (B, 4, 16, 16),
        "res5": (B, 4, 16, 16),
    }

    kq, kparams, kfeat, kw2, kb2 = jax.random.split(key, 5)
    q_condition = jax.random.normal(kq, (B, input_queries, input_dim),
                                    jnp.float32)

    feat_keys = jax.random.split(kfeat, len(level_shapes) * len(modalities))
    features = {}
    ki = 0
    for level, shape in level_shapes.items():
        features[level] = {}
        for m in modalities:
            features[level][m] = jax.random.normal(
                feat_keys[ki], shape, jnp.float32) + 0.1 * float(ki)
            ki += 1

    module = QueryGuidedAdditionFusionPallas(
        modalities, fusion_levels, input_dim, input_queries, kparams)

    # --- 1) Faithful PyTorch init (w2 = 0, b2 one-hot on main modality) ---
    fused = module(features, q_condition)
    jax.block_until_ready(fused)
    ref = reference_forward(module.params, features, q_condition,
                            modalities, fusion_levels, module.main_modality)
    for level, shape in level_shapes.items():
        assert fused[level].shape == shape, level
        assert jnp.allclose(fused[level], ref[level],
                            atol=1e-4, rtol=1e-4), level
    # pass-through level must be exactly the main modality
    assert jnp.array_equal(fused["res5"], features["res5"][modalities[0]])

    # --- 2) Randomized head to exercise the query-dependent weight path ---
    module.params["w2"] = jax.random.normal(
        kw2, (input_dim, len(modalities)), jnp.float32) * 0.1
    module.params["b2"] = jax.random.normal(
        kb2, (1, len(modalities)), jnp.float32) * 0.1
    fused2 = module(features, q_condition)
    jax.block_until_ready(fused2)
    ref2 = reference_forward(module.params, features, q_condition,
                             modalities, fusion_levels, module.main_modality)
    for level in level_shapes:
        assert jnp.allclose(fused2[level], ref2[level],
                            atol=1e-4, rtol=1e-4), level

    print("KERNEL_OK")
</pallas_src>

<mosaic_0001>
module attributes {stable_mosaic.version = 11 : i64} {
  func.func @kernel(%arg0: i32, %arg1: i32, %arg2: memref<4xf32, #tpu.memory_space<smem>>, %arg3: memref<1x88x128xf32, #tpu.memory_space<vmem>>, %arg4: memref<1x88x128xf32, #tpu.memory_space<vmem>>, %arg5: memref<1x88x128xf32, #tpu.memory_space<vmem>>) attributes {dimension_semantics = [#tpu.dimension_semantics<parallel>, #tpu.dimension_semantics<parallel>], iteration_bounds = array<i64: 2, 3>, scalar_prefetch = 0 : i64, scratch_operands = 0 : i64, tpu.core_type = #tpu.core_type<tc>, window_params = [{transform_indices = @transform_0, window_bounds = array<i64: 4>}, {transform_indices = @transform_1, window_bounds = array<i64: 1, 88, 128>}, {transform_indices = @transform_2, window_bounds = array<i64: 1, 88, 128>}, {transform_indices = @transform_3, window_bounds = array<i64: 1, 88, 128>}]} {
    %c2_i32 = arith.constant 2 : i32
    %0 = arith.muli %arg0, %c2_i32 : i32
    %c0 = arith.constant 0 : index
    %c0_0 = arith.constant 0 : index
    %c0_1 = arith.constant 0 : index
    %1 = vector.load %arg3[%c0, %c0_0, %c0_1] : memref<1x88x128xf32, #tpu.memory_space<vmem>>, vector<1x88x128xf32>
    %2 = vector.shape_cast %1 : vector<1x88x128xf32> to vector<88x128xf32>
    %3 = arith.index_cast %0 : i32 to index
    %4 = memref.load %arg2[%3] : memref<4xf32, #tpu.memory_space<smem>>
    %5 = vector.broadcast %4 : f32 to vector<88x128xf32>
    %6 = arith.mulf %2, %5 : vector<88x128xf32>
    %c0_2 = arith.constant 0 : index
    %c0_3 = arith.constant 0 : index
    %c0_4 = arith.constant 0 : index
    %7 = vector.load %arg4[%c0_2, %c0_3, %c0_4] : memref<1x88x128xf32, #tpu.memory_space<vmem>>, vector<1x88x128xf32>
    %8 = vector.shape_cast %7 : vector<1x88x128xf32> to vector<88x128xf32>
    %c1_i32 = arith.constant 1 : i32
    %9 = arith.addi %0, %c1_i32 : i32
    %10 = arith.index_cast %9 : i32 to index
    %11 = memref.load %arg2[%10] : memref<4xf32, #tpu.memory_space<smem>>
    %12 = vector.broadcast %11 : f32 to vector<88x128xf32>
    %13 = arith.mulf %8, %12 : vector<88x128xf32>
    %14 = arith.addf %6, %13 : vector<88x128xf32>
    %c0_5 = arith.constant 0 : index
    %c0_6 = arith.constant 0 : index
    %c0_7 = arith.constant 0 : index
    %15 = vector.load %arg5[%c0_5, %c0_6, %c0_7] : memref<1x88x128xf32, #tpu.memory_space<vmem>>, vector<1x88x128xf32>
    %16 = vector.shape_cast %15 : vector<1x88x128xf32> to vector<88x128xf32>
    %17 = vector.shape_cast %14 : vector<88x128xf32> to vector<1x88x128xf32>
    tpu.vector_store %arg5[%c0_5, %c0_6, %c0_7], %17 {strides = array<i32>} : memref<1x88x128xf32, #tpu.memory_space<vmem>>, vector<1x88x128xf32>,
    return
  }
  func.func @transform_0(%arg0: i32, %arg1: i32) -> i32 {
    %c0_i32 = arith.constant 0 : i32
    %c0_i32_0 = arith.constant 0 : i32
    return %c0_i32 : i32
  }
  func.func @transform_1(%arg0: i32, %arg1: i32) -> (i32, i32, i32) {
    %c0_i32 = arith.constant 0 : i32
    %c0_i32_0 = arith.constant 0 : i32
    return %arg0, %arg1, %c0_i32 : i32, i32, i32
  }
  func.func @transform_2(%arg0: i32, %arg1: i32) -> (i32, i32, i32) {
    %c0_i32 = arith.constant 0 : i32
    %c0_i32_0 = arith.constant 0 : i32
    return %arg0, %arg1, %c0_i32 : i32, i32, i32
  }
  func.func @transform_3(%arg0: i32, %arg1: i32) -> (i32, i32, i32) {
    %c0_i32 = arith.constant 0 : i32
    %c0_i32_0 = arith.constant 0 : i32
    return %arg0, %arg1, %c0_i32 : i32, i32, i32
  }
}

module attributes {stable_mosaic.version = 11 : i64} {
  func.func @kernel(%arg0: i32, %arg1: i32, %arg2: memref<4xf32, #tpu.memory_space<smem>>, %arg3: memref<1x128x128xf32, #tpu.memory_space<vmem>>, %arg4: memref<1x128x128xf32, #tpu.memory_space<vmem>>, %arg5: memref<1x128x128xf32, #tpu.memory_space<vmem>>) attributes {dimension_semantics = [#tpu.dimension_semantics<parallel>, #tpu.dimension_semantics<parallel>], iteration_bounds = array<i64: 2, 2>, scalar_prefetch = 0 : i64, scratch_operands = 0 : i64, tpu.core_type = #tpu.core_type<tc>, window_params = [{transform_indices = @transform_0, window_bounds = array<i64: 4>}, {transform_indices = @transform_1, window_bounds = array<i64: 1, 128, 128>}, {transform_indices = @transform_2, window_bounds = array<i64: 1, 128, 128>}, {transform_indices = @transform_3, window_bounds = array<i64: 1, 128, 128>}]} {
    %c2_i32 = arith.constant 2 : i32
    %0 = arith.muli %arg0, %c2_i32 : i32
    %c0 = arith.constant 0 : index
    %c0_0 = arith.constant 0 : index
    %c0_1 = arith.constant 0 : index
    %1 = vector.load %arg3[%c0, %c0_0, %c0_1] : memref<1x128x128xf32, #tpu.memory_space<vmem>>, vector<1x128x128xf32>
    %2 = vector.shape_cast %1 : vector<1x128x128xf32> to vector<128x128xf32>
    %3 = arith.index_cast %0 : i32 to index
    %4 = memref.load %arg2[%3] : memref<4xf32, #tpu.memory_space<smem>>
    %5 = vector.broadcast %4 : f32 to vector<128x128xf32>
    %6 = arith.mulf %2, %5 : vector<128x128xf32>
    %c0_2 = arith.constant 0 : index
    %c0_3 = arith.constant 0 : index
    %c0_4 = arith.constant 0 : index
    %7 = vector.load %arg4[%c0_2, %c0_3, %c0_4] : memref<1x128x128xf32, #tpu.memory_space<vmem>>, vector<1x128x128xf32>
    %8 = vector.shape_cast %7 : vector<1x128x128xf32> to vector<128x128xf32>
    %c1_i32 = arith.constant 1 : i32
    %9 = arith.addi %0, %c1_i32 : i32
    %10 = arith.index_cast %9 : i32 to index
    %11 = memref.load %arg2[%10] : memref<4xf32, #tpu.memory_space<smem>>
    %12 = vector.broadcast %11 : f32 to vector<128x128xf32>
    %13 = arith.mulf %8, %12 : vector<128x128xf32>
    %14 = arith.addf %6, %13 : vector<128x128xf32>
    %c0_5 = arith.constant 0 : index
    %c0_6 = arith.constant 0 : index
    %c0_7 = arith.constant 0 : index
    %15 = vector.load %arg5[%c0_5, %c0_6, %c0_7] : memref<1x128x128xf32, #tpu.memory_space<vmem>>, vector<1x128x128xf32>
    %16 = vector.shape_cast %15 : vector<1x128x128xf32> to vector<128x128xf32>
    %17 = vector.shape_cast %14 : vector<128x128xf32> to vector<1x128x128xf32>
    tpu.vector_store %arg5[%c0_5, %c0_6, %c0_7], %17 {strides = array<i32>} : memref<1x128x128xf32, #tpu.memory_space<vmem>>, vector<1x128x128xf32>,
    return
  }
  func.func @transform_0(%arg0: i32, %arg1: i32) -> i32 {
    %c0_i32 = arith.constant 0 : i32
    %c0_i32_0 = arith.constant 0 : i32
    return %c0_i32 : i32
  }
  func.func @transform_1(%arg0: i32, %arg1: i32) -> (i32, i32, i32) {
    %c0_i32 = arith.constant 0 : i32
    %c0_i32_0 = arith.constant 0 : i32
    return %arg0, %arg1, %c0_i32 : i32, i32, i32
  }
  func.func @transform_2(%arg0: i32, %arg1: i32) -> (i32, i32, i32) {
    %c0_i32 = arith.constant 0 : i32
    %c0_i32_0 = arith.constant 0 : i32
    return %arg0, %arg1, %c0_i32 : i32, i32, i32
  }
  func.func @transform_3(%arg0: i32, %arg1: i32) -> (i32, i32, i32) {
    %c0_i32 = arith.constant 0 : i32
    %c0_i32_0 = arith.constant 0 : i32
    return %arg0, %arg1, %c0_i32 : i32, i32, i32
  }
}

</mosaic_0001>

<llo_original>
// kernel: qga_forward.3
$region0: #{qga_forward.3}
  #allocation0 [shape = 'u32[]', space=smem, size = 0x4, offset = 0x4, fixed_abs, tag = 'smem constant byte address 0x4 - core index']
  #allocation1 [shape = 'u32[144,128]{1,0:T(1,128)}', space=vmem, size = 0x12000, scoped, tag = 'internal scratch']
  %s0 = inlined_call_operand.vmem [shape: f32[4], index: 0, kind: input, shape index: {}]
  %s1 = inlined_call_operand.vmem [shape: f32[2,264,128], index: 1, kind: input, shape index: {}]
  %s2 = inlined_call_operand.vmem [shape: f32[2,264,128], index: 2, kind: input, shape index: {}]
  %s3 = inlined_call_operand.vmem [shape: f32[2,264,128], index: 3, kind: output, shape index: {}]
  %s4 = sld [smem:[#allocation0]]
  $region49: #{qga_forward.3} parent=0
    _
  %s6 = ssub.s32 1, %s4
  %s7 = scalar_select 0, %s6, %s4
  $region1: #{qga_forward.3} parent=0
    #allocation2 [shape = 'u8[512]{0}', space=smem, size = 0x200, scoped, tag = 'input window, operand 0, single buffered']
    #allocation3 [shape = 's32[2]{0}', space=sflag, size = 0x8, scoped, tag = 'scoped memory for qga_forward.3']
    %8 = vsyncpa [#allocation3], 0
    loop: start=0, step=1, limit=8
    $region2: #{qga_forward.3} parent=1 // loop_pre_header
      _
    $region3: #{qga_forward.3} parent=1 // loop_header
      %s10 = sphi 0, %s14
      %p11 = scmp.ge.s32.totalorder %s10, 8
      %s17 = sphi 0, %s29
      %s18 = sphi 0, %s25
      %s19 = sphi 0, %s17
      %s20 = sphi 0, %s18
      %s21 = sphi 0, %s19
      %s22 = sphi 0, %s20
      %s30 = sphi 0, %s30
      %s32 = sphi 0, %s30
      %s33 = sphi 0, %s32
      %s47 = sphi 0, %s33
      %s55 = sphi 0, %s57
      %s58 = sphi 0, %s55
      %s59 = sphi 0, %s58
      %s75 = sphi 0, %s59
      %s83 = sphi 0, %s85
      %s86 = sphi 0, %s83
      %s87 = sphi 0, %s86
      %s103 = sphi 0, %s87
      %s111 = sphi 0, %s113
      %s114 = sphi 0, %s111
      %s115 = sphi 0, %s114
      %s131 = sphi 0, %s115
    $region4: #{qga_forward.3} parent=1 // loop_header_branch
      %13 = sbr.rel (%p11) target = $region8
    $region5: #{qga_forward.3} parent=1 // loop_body
      %s15 = ssub.s32 %s10, 1
      %s16 = ssub.s32 %s10, 2
      %s23 = sadd.s32 1, %s18
      %p24 = scmp.ge.s32.totalorder %s23, 3
      %s25 = scalar_select %p24, 0, %s23
      %s26 = sadd.s32 1, %s17
      %s27 = scalar_select %p24, %s26, %s17
      %p28 = scmp.ge.s32.totalorder %s27, 2
      %s29 = scalar_select %p28, 0, %s27
      %s31 = sadd.s32 %s30, 1
      %p34 = scmp.eq.s32.totalorder %s10, 5
      %p35 = scmp.ne.s32.totalorder %s30, %s32
      %p36 = scmp.eq.s32.totalorder %s10, 0
      %p37 = por %p35, %p36
      %p38 = scmp.ne.s32.totalorder %s30, %s32
      %p39 = scmp.eq.s32.totalorder %s15, 5
      %p40 = por %p38, %p39
      %p41 = scmp.ne.s32.totalorder %s32, %s33
      %p42 = scmp.eq.s32.totalorder %s15, 0
      %p43 = por %p41, %p42
      %p44 = scmp.ne.s32.totalorder %s32, %s33
      %p45 = scmp.eq.s32.totalorder %s16, 5
      %p46 = por %p44, %p45
      %p48 = scmp.ne.s32.totalorder %s33, %s47
      %p49 = scmp.eq.s32.totalorder %s16, 0
      %p50 = por %p48, %p49
      %s51 = ssub.s32 %s17, %s29
      %s52 = ssub.s32 %s18, %s25
      %s53 = sor.u32 %s51, %s52
      %p54 = scmp.eq.s32.totalorder %s53, 0
      %s56 = sadd.s32 %s55, 1
      %s57 = scalar_select %p54, %s55, %s56
      %p60 = pneg %p54
      %p61 = scmp.eq.s32.totalorder %s10, 5
      %p62 = por %p60, %p61
      %p63 = scmp.ne.s32.totalorder %s55, %s58
      %p64 = scmp.eq.s32.totalorder %s10, 0
      %p65 = por %p63, %p64
      %p66 = scmp.ne.s32.totalorder %s55, %s58
      %p67 = scmp.eq.s32.totalorder %s15, 5
      %p68 = por %p66, %p67
      %p69 = scmp.ne.s32.totalorder %s58, %s59
      %p70 = scmp.eq.s32.totalorder %s15, 0
      %p71 = por %p69, %p70
      %p72 = scmp.ne.s32.totalorder %s58, %s59
      %p73 = scmp.eq.s32.totalorder %s16, 5
      %p74 = por %p72, %p73
      %p76 = scmp.ne.s32.totalorder %s59, %s75
      %p77 = scmp.eq.s32.totalorder %s16, 0
      %p78 = por %p76, %p77
      %s79 = ssub.s32 %s17, %s29
      %s80 = ssub.s32 %s18, %s25
      %s81 = sor.u32 %s79, %s80
      %p82 = scmp.eq.s32.totalorder %s81, 0
      %s84 = sadd.s32 %s83, 1
      %s85 = scalar_select %p82, %s83, %s84
      %p88 = pneg %p82
      %p89 = scmp.eq.s32.totalorder %s10, 5
      %p90 = por %p88, %p89
      %p91 = scmp.ne.s32.totalorder %s83, %s86
      %p92 = scmp.eq.s32.totalorder %s10, 0
      %p93 = por %p91, %p92
      %p94 = scmp.ne.s32.totalorder %s83, %s86
      %p95 = scmp.eq.s32.totalorder %s15, 5
      %p96 = por %p94, %p95
      %p97 = scmp.ne.s32.totalorder %s86, %s87
      %p98 = scmp.eq.s32.totalorder %s15, 0
      %p99 = por %p97, %p98
      %p100 = scmp.ne.s32.totalorder %s86, %s87
      %p101 = scmp.eq.s32.totalorder %s16, 5
      %p102 = por %p100, %p101
      %p104 = scmp.ne.s32.totalorder %s87, %s103
      %p105 = scmp.eq.s32.totalorder %s16, 0
      %p106 = por %p104, %p105
      %s107 = ssub.s32 %s17, %s29
      %s108 = ssub.s32 %s18, %s25
      %s109 = sor.u32 %s107, %s108
      %p110 = scmp.eq.s32.totalorder %s109, 0
      %s112 = sadd.s32 %s111, 1
      %s113 = scalar_select %p110, %s111, %s112
      %p116 = pneg %p110
      %p117 = scmp.eq.s32.totalorder %s10, 5
      %p118 = por %p116, %p117
      %p119 = scmp.ne.s32.totalorder %s111, %s114
      %p120 = scmp.eq.s32.totalorder %s10, 0
      %p121 = por %p119, %p120
      %p122 = scmp.ne.s32.totalorder %s111, %s114
      %p123 = scmp.eq.s32.totalorder %s15, 5
      %p124 = por %p122, %p123
      %p125 = scmp.ne.s32.totalorder %s114, %s115
      %p126 = scmp.eq.s32.totalorder %s15, 0
      %p127 = por %p125, %p126
      %p128 = scmp.ne.s32.totalorder %s114, %s115
      %p129 = scmp.eq.s32.totalorder %s16, 5
      %p130 = por %p128, %p129
      %p132 = scmp.ne.s32.totalorder %s115, %s131
      %p133 = scmp.eq.s32.totalorder %s16, 0
      %p134 = por %p132, %p133
      %p135 = scmp.le.s32.totalorder 1, %s10
      %p136 = scmp.lt.s32.totalorder %s10, 7
      %p137 = pnand %p135, %p136
      %p138 = pneg %p137
      // Predicated region
      $region9: #{qga_forward.3} parent=5 // pred_check
        _
      $region10: #{qga_forward.3} parent=5 // pred_check_branch
        %140 = sbr.rel (%p137) target = $region12
      $region11: #{qga_forward.3} parent=5 // pred_region
        %s141 = ssub.s32 %s10, 1
        // Predicated region
        $region13: #{qga_forward.3} parent=11 // pred_check
          %p142 = pneg %p43
        $region14: #{qga_forward.3} parent=11 // pred_check_branch
          %144 = sbr.rel (%p142) target = $region16
        $region15: #{qga_forward.3} parent=11 // pred_region
          %s146 = ssub.s32 16, 16
          %147 = vsyncadd [#allocation3], %s146
          %s149 = sshll.u32 %s0, 4
          %s150 = int_to_ptr.vmem [resolvable:$true] %s149
          %152 = dma.vmem_to_smem %s150, 16, [#allocation2], [#allocation3]
        $region16: #{qga_forward.3} parent=11 // pred_fallthru
          _
      $region12: #{qga_forward.3} parent=5 // pred_fallthru
        _
      %p153 = scmp.lt.s32.totalorder %s10, 6
      // Predicated region
      $region17: #{qga_forward.3} parent=5 // pred_check
        %p154 = pneg %p153
      $region18: #{qga_forward.3} parent=5 // pred_check_branch
        %156 = sbr.rel (%p154) target = $region20
      $region19: #{qga_forward.3} parent=5 // pred_region
        // Predicated region
        $region21: #{qga_forward.3} parent=19 // pred_check
          %p157 = pneg %p65
        $region22: #{qga_forward.3} parent=19 // pred_check_branch
          %159 = sbr.rel (%p157) target = $region24
        $region23: #{qga_forward.3} parent=19 // pred_region
          %s160 = smul.u32 11, %s18
          %p161 = scmp.lt.s32.totalorder %s17, 1
          %s162 = scalar_select %p161, %s17, 1
          %p163 = scmp.lt.s32.totalorder %s160, 32
          %s164 = scalar_select %p163, %s160, 32
          %s165 = smul.addr %s162, 33
          %s166 = sadd.s32 %s164, %s165
          %s167 = smul.addr %s166, 8
          %s168 = scalar_lea.vmem %s1, %s167
          %s169 = smul.u32 11, %s18
        $region24: #{qga_forward.3} parent=19 // pred_fallthru
          _
        // Predicated region
        $region25: #{qga_forward.3} parent=19 // pred_check
          %p170 = pneg %p93
        $region26: #{qga_forward.3} parent=19 // pred_check_branch
          %172 = sbr.rel (%p170) target = $region28
        $region27: #{qga_forward.3} parent=19 // pred_region
          %s173 = smul.u32 11, %s18
          %p174 = scmp.lt.s32.totalorder %s17, 1
          %s175 = scalar_select %p174, %s17, 1
          %p176 = scmp.lt.s32.totalorder %s173, 32
          %s177 = scalar_select %p176, %s173, 32
          %s178 = smul.addr %s175, 33
          %s179 = sadd.s32 %s177, %s178
          %s180 = smul.addr %s179, 8
          %s181 = scalar_lea.vmem %s2, %s180
          %s182 = smul.u32 11, %s18
        $region28: #{qga_forward.3} parent=19 // pred_fallthru
          _
      $region20: #{qga_forward.3} parent=5 // pred_fallthru
        _
      %p183 = scmp.le.s32.totalorder 1, %s10
      %p184 = scmp.lt.s32.totalorder %s10, 7
      %p185 = pnand %p183, %p184
      %p186 = pneg %p185
      // Predicated region
      $region29: #{qga_forward.3} parent=5 // pred_check
        _
      $region30: #{qga_forward.3} parent=5 // pred_check_branch
        %188 = sbr.rel (%p185) target = $region32
      $region31: #{qga_forward.3} parent=5 // pred_region
        %s189 = ssub.s32 %s10, 1
        // Predicated region
        $region33: #{qga_forward.3} parent=31 // pred_check
          %p190 = pneg %p43
        $region34: #{qga_forward.3} parent=31 // pred_check_branch
          %192 = sbr.rel (%p190) target = $region36
        $region35: #{qga_forward.3} parent=31 // pred_region
          %193 = dma.done [#allocation3], 16
        $region36: #{qga_forward.3} parent=31 // pred_fallthru
          _
        %194 = sfence
        %p195 = pneg %p43
        %p196 = pneg %p40
        %s197 = smul.u32 11, %s20
        %p198 = scmp.lt.s32.totalorder %s19, 1
        %s199 = scalar_select %p198, %s19, 1
        %p200 = scmp.lt.s32.totalorder %s197, 32
        %s201 = scalar_select %p200, %s197, 32
        %s202 = smul.addr %s199, 33
        %s203 = sadd.s32 %s201, %s202
        %s204 = smul.addr %s203, 8
        %s205 = scalar_lea.vmem %s1, %s204
        %p206 = pneg %p71
        %p207 = pneg %p68
        %s208 = smul.u32 11, %s20
        %p209 = scmp.lt.s32.totalorder %s19, 1
        %s210 = scalar_select %p209, %s19, 1
        %p211 = scmp.lt.s32.totalorder %s208, 32
        %s212 = scalar_select %p211, %s208, 32
        %s213 = smul.addr %s210, 33
        %s214 = sadd.s32 %s212, %s213
        %s215 = smul.addr %s214, 8
        %s216 = scalar_lea.vmem %s2, %s215
        %p217 = pneg %p99
        %p218 = pneg %p96
        %p219 = pneg %p127
        %p220 = pneg %p124
        %s221 = smul.u32 11, %s20
        %p222 = scmp.lt.s32.totalorder %s19, 1
        %s223 = scalar_select %p222, %s19, 1
        %p224 = scmp.lt.s32.totalorder %s221, 32
        %s225 = scalar_select %p224, %s221, 32
        %s226 = smul.addr %s223, 33
        %s227 = sadd.s32 %s225, %s226
        %s228 = smul.addr %s227, 8
        %s229 = scalar_lea.vmem %s3, %s228
        %s230 = smul.u32 11, %s20
        %p231 = scmp.lt.s32.totalorder %s19, 1
        %s232 = scalar_select %p231, %s19, 1
        %p233 = scmp.lt.s32.totalorder %s230, 32
        %s234 = scalar_select %p233, %s230, 32
        %s235 = smul.addr %s232, 33
        %s236 = sadd.s32 %s234, %s235
        %s237 = smul.addr %s236, 8
        %s238 = scalar_lea.vmem %s1, %s237
        %s239 = smul.u32 11, %s20
        %s240 = smul.u32 11, %s20
        %p241 = scmp.lt.s32.totalorder %s19, 1
        %s242 = scalar_select %p241, %s19, 1
        %p243 = scmp.lt.s32.totalorder %s240, 32
        %s244 = scalar_select %p243, %s240, 32
        %s245 = smul.addr %s242, 33
        %s246 = sadd.s32 %s244, %s245
        %s247 = smul.addr %s246, 8
        %s248 = scalar_lea.vmem %s2, %s247
        %s249 = smul.u32 11, %s20
        %s250 = smul.u32 11, %s20
        %p251 = scmp.lt.s32.totalorder %s19, 1
        %s252 = scalar_select %p251, %s19, 1
        %p253 = scmp.lt.s32.totalorder %s250, 32
        %s254 = scalar_select %p253, %s250, 32
        %s255 = smul.addr %s252, 33
        %s256 = sadd.s32 %s254, %s255
        %s257 = smul.addr %s256, 8
        %s258 = scalar_lea.vmem %s3, %s257
        %s259 = smul.u32 11, %s20
        %s260 = smul.u32 %s19, 2
        %v261 = vld [vmem:[%s238] sm:$0xff]
        %v262 = vld [vmem:[%s238 + $0x8] sm:$0xff]
        %v263 = vld [vmem:[%s238 + $0x10] sm:$0xff]
        %v264 = vld [vmem:[%s238 + $0x18] sm:$0xff]
        %v265 = vld [vmem:[%s238 + $0x20] sm:$0xff]
        %v266 = vld [vmem:[%s238 + $0x28] sm:$0xff]
        %v267 = vld [vmem:[%s238 + $0x30] sm:$0xff]
        %v268 = vld [vmem:[%s238 + $0x38] sm:$0xff]
        %v269 = vld [vmem:[%s238 + $0x40] sm:$0xff]
        %v270 = vld [vmem:[%s238 + $0x48] sm:$0xff]
        %v271 = vld [vmem:[%s238 + $0x50] sm:$0xff]
        %s272 = sld [smem:[#allocation2 + %s260]]
        %v273 = vstv %s272
        %v274 = vmul.f32 %v261, %v273
        %v275 = vmul.f32 %v262, %v273
        %v276 = vmul.f32 %v263, %v273
        %v277 = vmul.f32 %v264, %v273
        %v278 = vmul.f32 %v265, %v273
        %v279 = vmul.f32 %v266, %v273
        %v280 = vmul.f32 %v267, %v273
        %v281 = vmul.f32 %v268, %v273
        %v282 = vmul.f32 %v269, %v273
        %v283 = vmul.f32 %v270, %v273
        %v284 = vmul.f32 %v271, %v273
        %v285 = vld [vmem:[%s248] sm:$0xff]
        %v286 = vld [vmem:[%s248 + $0x8] sm:$0xff]
        %v287 = vld [vmem:[%s248 + $0x10] sm:$0xff]
        %v288 = vld [vmem:[%s248 + $0x18] sm:$0xff]
        %v289 = vld [vmem:[%s248 + $0x20] sm:$0xff]
        %v290 = vld [vmem:[%s248 + $0x28] sm:$0xff]
        %v291 = vld [vmem:[%s248 + $0x30] sm:$0xff]
        %v292 = vld [vmem:[%s248 + $0x38] sm:$0xff]
        %v293 = vld [vmem:[%s248 + $0x40] sm:$0xff]
        %v294 = vld [vmem:[%s248 + $0x48] sm:$0xff]
        %v295 = vld [vmem:[%s248 + $0x50] sm:$0xff]
        %s296 = sadd.s32 %s260, 1
        %s297 = sld [smem:[#allocation2 + %s296]]
        %v298 = vstv %s297
        %v299 = vmul.f32 %v285, %v298
        %v300 = vmul.f32 %v286, %v298
        %v301 = vmul.f32 %v287, %v298
        %v302 = vmul.f32 %v288, %v298
        %v303 = vmul.f32 %v289, %v298
        %v304 = vmul.f32 %v290, %v298
        %v305 = vmul.f32 %v291, %v298
        %v306 = vmul.f32 %v292, %v298
        %v307 = vmul.f32 %v293, %v298
        %v308 = vmul.f32 %v294, %v298
        %v309 = vmul.f32 %v295, %v298
        %v310 = vadd.f32 %v274, %v299
        %v311 = vadd.f32 %v275, %v300
        %v312 = vadd.f32 %v276, %v301
        %v313 = vadd.f32 %v277, %v302
        %v314 = vadd.f32 %v278, %v303
        %v315 = vadd.f32 %v279, %v304
        %v316 = vadd.f32 %v280, %v305
        %v317 = vadd.f32 %v281, %v306
        %v318 = vadd.f32 %v282, %v307
        %v319 = vadd.f32 %v283, %v308
        %v320 = vadd.f32 %v284, %v309
        %321 = vst [vmem:[%s258] sm:$0xff] %v310
        %322 = vst [vmem:[%s258 + $0x8] sm:$0xff] %v311
        %323 = vst [vmem:[%s258 + $0x10] sm:$0xff] %v312
        %324 = vst [vmem:[%s258 + $0x18] sm:$0xff] %v313
        %325 = vst [vmem:[%s258 + $0x20] sm:$0xff] %v314
        %326 = vst [vmem:[%s258 + $0x28] sm:$0xff] %v315
        %327 = vst [vmem:[%s258 + $0x30] sm:$0xff] %v316
        %328 = vst [vmem:[%s258 + $0x38] sm:$0xff] %v317
        %329 = vst [vmem:[%s258 + $0x40] sm:$0xff] %v318
        %330 = vst [vmem:[%s258 + $0x48] sm:$0xff] %v319
        %331 = vst [vmem:[%s258 + $0x50] sm:$0xff] %v320
        %s332 = smul.u32 11, %s20
        %p333 = scmp.lt.s32.totalorder %s19, 1
        %s334 = scalar_select %p333, %s19, 1
        %p335 = scmp.lt.s32.totalorder %s332, 32
        %s336 = scalar_select %p335, %s332, 32
        %s337 = smul.addr %s334, 33
        %s338 = sadd.s32 %s336, %s337
        %s339 = smul.addr %s338, 8
        %s340 = scalar_lea.vmem %s3, %s339
        // Predicated region
        $region37: #{qga_forward.3} parent=31 // pred_check
          %p341 = pneg %p124
        $region38: #{qga_forward.3} parent=31 // pred_check_branch
          %343 = sbr.rel (%p341) target = $region40
        $region39: #{qga_forward.3} parent=31 // pred_region
          %s344 = smul.u32 11, %s20
        $region40: #{qga_forward.3} parent=31 // pred_fallthru
          _
      $region32: #{qga_forward.3} parent=5 // pred_fallthru
        _
      %p345 = scmp.le.s32.totalorder 2, %s10
      // Predicated region
      $region41: #{qga_forward.3} parent=5 // pred_check
        %p346 = pneg %p345
      $region42: #{qga_forward.3} parent=5 // pred_check_branch
        %348 = sbr.rel (%p346) target = $region44
      $region43: #{qga_forward.3} parent=5 // pred_region
        %s349 = ssub.s32 %s10, 2
        // Predicated region
        $region45: #{qga_forward.3} parent=43 // pred_check
          %p350 = pneg %p130
        $region46: #{qga_forward.3} parent=43 // pred_check_branch
          %352 = sbr.rel (%p350) target = $region48
        $region47: #{qga_forward.3} parent=43 // pred_region
          %s353 = smul.u32 11, %s22
          %p354 = scmp.lt.s32.totalorder %s21, 1
          %s355 = scalar_select %p354, %s21, 1
          %p356 = scmp.lt.s32.totalorder %s353, 32
          %s357 = scalar_select %p356, %s353, 32
          %s358 = smul.addr %s355, 33
          %s359 = sadd.s32 %s357, %s358
          %s360 = smul.addr %s359, 8
          %s361 = scalar_lea.vmem %s3, %s360
        $region48: #{qga_forward.3} parent=43 // pred_fallthru
          _
      $region44: #{qga_forward.3} parent=5 // pred_fallthru
        _
    $region6: #{qga_forward.3} parent=1 // loop_footer
      %s14 = sadd.s32 1, %s10
    $region7: #{qga_forward.3} parent=1 // loop_footer_branch
      %9 = sbr.rel target = $region3
    $region8: #{qga_forward.3} parent=1 // loop_exit
      _
    %362 = vsyncpa [#allocation3], 1
    %s363 = scalar_lea.sflag [#allocation3], 1
    %364 = vsyncpa %s363, 1

// kernel: qga_forward.2
$region0: #{qga_forward.2}
  #allocation0 [shape = 'u32[]', space=smem, size = 0x4, offset = 0x4, fixed_abs, tag = 'smem constant byte address 0x4 - core index']
  #allocation1 [shape = 'u32[144,128]{1,0:T(1,128)}', space=vmem, size = 0x12000, scoped, tag = 'internal scratch']
  %s0 = inlined_call_operand.vmem [shape: f32[4], index: 0, kind: input, shape index: {}]
  %s1 = inlined_call_operand.vmem [shape: f32[2,256,128], index: 1, kind: input, shape index: {}]
  %s2 = inlined_call_operand.vmem [shape: f32[2,256,128], index: 2, kind: input, shape index: {}]
  %s3 = inlined_call_operand.vmem [shape: f32[2,256,128], index: 3, kind: output, shape index: {}]
  %s4 = sld [smem:[#allocation0]]
  $region49: #{qga_forward.2} parent=0
    _
  %s6 = ssub.s32 1, %s4
  %s7 = scalar_select 0, %s6, %s4
  $region1: #{qga_forward.2} parent=0
    #allocation2 [shape = 'u8[512]{0}', space=smem, size = 0x200, scoped, tag = 'input window, operand 0, single buffered']
    #allocation3 [shape = 's32[2]{0}', space=sflag, size = 0x8, scoped, tag = 'scoped memory for qga_forward.2']
    %8 = vsyncpa [#allocation3], 0
    loop: start=0, step=1, limit=6
    $region2: #{qga_forward.2} parent=1 // loop_pre_header
      _
    $region3: #{qga_forward.2} parent=1 // loop_header
      %s10 = sphi 0, %s14
      %p11 = scmp.ge.s32.totalorder %s10, 6
      %s17 = sphi 0, %s29
      %s18 = sphi 0, %s25
      %s19 = sphi 0, %s17
      %s20 = sphi 0, %s18
      %s21 = sphi 0, %s19
      %s22 = sphi 0, %s20
      %s30 = sphi 0, %s30
      %s32 = sphi 0, %s30
      %s33 = sphi 0, %s32
      %s47 = sphi 0, %s33
      %s55 = sphi 0, %s57
      %s58 = sphi 0, %s55
      %s59 = sphi 0, %s58
      %s75 = sphi 0, %s59
      %s83 = sphi 0, %s85
      %s86 = sphi 0, %s83
      %s87 = sphi 0, %s86
      %s103 = sphi 0, %s87
      %s111 = sphi 0, %s113
      %s114 = sphi 0, %s111
      %s115 = sphi 0, %s114
      %s131 = sphi 0, %s115
    $region4: #{qga_forward.2} parent=1 // loop_header_branch
      %13 = sbr.rel (%p11) target = $region8
    $region5: #{qga_forward.2} parent=1 // loop_body
      %s15 = ssub.s32 %s10, 1
      %s16 = ssub.s32 %s10, 2
      %s23 = sadd.s32 1, %s18
      %p24 = scmp.ge.s32.totalorder %s23, 2
      %s25 = scalar_select %p24, 0, %s23
      %s26 = sadd.s32 1, %s17
      %s27 = scalar_select %p24, %s26, %s17
      %p28 = scmp.ge.s32.totalorder %s27, 2
      %s29 = scalar_select %p28, 0, %s27
      %s31 = sadd.s32 %s30, 1
      %p34 = scmp.eq.s32.totalorder %s10, 3
      %p35 = scmp.ne.s32.totalorder %s30, %s32
      %p36 = scmp.eq.s32.totalorder %s10, 0
      %p37 = por %p35, %p36
      %p38 = scmp.ne.s32.totalorder %s30, %s32
      %p39 = scmp.eq.s32.totalorder %s15, 3
      %p40 = por %p38, %p39
      %p41 = scmp.ne.s32.totalorder %s32, %s33
      %p42 = scmp.eq.s32.totalorder %s15, 0
      %p43 = por %p41, %p42
      %p44 = scmp.ne.s32.totalorder %s32, %s33
      %p45 = scmp.eq.s32.totalorder %s16, 3
      %p46 = por %p44, %p45
      %p48 = scmp.ne.s32.totalorder %s33, %s47
      %p49 = scmp.eq.s32.totalorder %s16, 0
      %p50 = por %p48, %p49
      %s51 = ssub.s32 %s17, %s29
      %s52 = ssub.s32 %s18, %s25
      %s53 = sor.u32 %s51, %s52
      %p54 = scmp.eq.s32.totalorder %s53, 0
      %s56 = sadd.s32 %s55, 1
      %s57 = scalar_select %p54, %s55, %s56
      %p60 = pneg %p54
      %p61 = scmp.eq.s32.totalorder %s10, 3
      %p62 = por %p60, %p61
      %p63 = scmp.ne.s32.totalorder %s55, %s58
      %p64 = scmp.eq.s32.totalorder %s10, 0
      %p65 = por %p63, %p64
      %p66 = scmp.ne.s32.totalorder %s55, %s58
      %p67 = scmp.eq.s32.totalorder %s15, 3
      %p68 = por %p66, %p67
      %p69 = scmp.ne.s32.totalorder %s58, %s59
      %p70 = scmp.eq.s32.totalorder %s15, 0
      %p71 = por %p69, %p70
      %p72 = scmp.ne.s32.totalorder %s58, %s59
      %p73 = scmp.eq.s32.totalorder %s16, 3
      %p74 = por %p72, %p73
      %p76 = scmp.ne.s32.totalorder %s59, %s75
      %p77 = scmp.eq.s32.totalorder %s16, 0
      %p78 = por %p76, %p77
      %s79 = ssub.s32 %s17, %s29
      %s80 = ssub.s32 %s18, %s25
      %s81 = sor.u32 %s79, %s80
      %p82 = scmp.eq.s32.totalorder %s81, 0
      %s84 = sadd.s32 %s83, 1
      %s85 = scalar_select %p82, %s83, %s84
      %p88 = pneg %p82
      %p89 = scmp.eq.s32.totalorder %s10, 3
      %p90 = por %p88, %p89
      %p91 = scmp.ne.s32.totalorder %s83, %s86
      %p92 = scmp.eq.s32.totalorder %s10, 0
      %p93 = por %p91, %p92
      %p94 = scmp.ne.s32.totalorder %s83, %s86
      %p95 = scmp.eq.s32.totalorder %s15, 3
      %p96 = por %p94, %p95
      %p97 = scmp.ne.s32.totalorder %s86, %s87
      %p98 = scmp.eq.s32.totalorder %s15, 0
      %p99 = por %p97, %p98
      %p100 = scmp.ne.s32.totalorder %s86, %s87
      %p101 = scmp.eq.s32.totalorder %s16, 3
      %p102 = por %p100, %p101
      %p104 = scmp.ne.s32.totalorder %s87, %s103
      %p105 = scmp.eq.s32.totalorder %s16, 0
      %p106 = por %p104, %p105
      %s107 = ssub.s32 %s17, %s29
      %s108 = ssub.s32 %s18, %s25
      %s109 = sor.u32 %s107, %s108
      %p110 = scmp.eq.s32.totalorder %s109, 0
      %s112 = sadd.s32 %s111, 1
      %s113 = scalar_select %p110, %s111, %s112
      %p116 = pneg %p110
      %p117 = scmp.eq.s32.totalorder %s10, 3
      %p118 = por %p116, %p117
      %p119 = scmp.ne.s32.totalorder %s111, %s114
      %p120 = scmp.eq.s32.totalorder %s10, 0
      %p121 = por %p119, %p120
      %p122 = scmp.ne.s32.totalorder %s111, %s114
      %p123 = scmp.eq.s32.totalorder %s15, 3
      %p124 = por %p122, %p123
      %p125 = scmp.ne.s32.totalorder %s114, %s115
      %p126 = scmp.eq.s32.totalorder %s15, 0
      %p127 = por %p125, %p126
      %p128 = scmp.ne.s32.totalorder %s114, %s115
      %p129 = scmp.eq.s32.totalorder %s16, 3
      %p130 = por %p128, %p129
      %p132 = scmp.ne.s32.totalorder %s115, %s131
      %p133 = scmp.eq.s32.totalorder %s16, 0
      %p134 = por %p132, %p133
      %p135 = scmp.le.s32.totalorder 1, %s10
      %p136 = scmp.lt.s32.totalorder %s10, 5
      %p137 = pnand %p135, %p136
      %p138 = pneg %p137
      // Predicated region
      $region9: #{qga_forward.2} parent=5 // pred_check
        _
      $region10: #{qga_forward.2} parent=5 // pred_check_branch
        %140 = sbr.rel (%p137) target = $region12
      $region11: #{qga_forward.2} parent=5 // pred_region
        %s141 = ssub.s32 %s10, 1
        // Predicated region
        $region13: #{qga_forward.2} parent=11 // pred_check
          %p142 = pneg %p43
        $region14: #{qga_forward.2} parent=11 // pred_check_branch
          %144 = sbr.rel (%p142) target = $region16
        $region15: #{qga_forward.2} parent=11 // pred_region
          %s146 = ssub.s32 16, 16
          %147 = vsyncadd [#allocation3], %s146
          %s149 = sshll.u32 %s0, 4
          %s150 = int_to_ptr.vmem [resolvable:$true] %s149
          %152 = dma.vmem_to_smem %s150, 16, [#allocation2], [#allocation3]
        $region16: #{qga_forward.2} parent=11 // pred_fallthru
          _
      $region12: #{qga_forward.2} parent=5 // pred_fallthru
        _
      %p153 = scmp.lt.s32.totalorder %s10, 4
      // Predicated region
      $region17: #{qga_forward.2} parent=5 // pred_check
        %p154 = pneg %p153
      $region18: #{qga_forward.2} parent=5 // pred_check_branch
        %156 = sbr.rel (%p154) target = $region20
      $region19: #{qga_forward.2} parent=5 // pred_region
        // Predicated region
        $region21: #{qga_forward.2} parent=19 // pred_check
          %p157 = pneg %p65
        $region22: #{qga_forward.2} parent=19 // pred_check_branch
          %159 = sbr.rel (%p157) target = $region24
        $region23: #{qga_forward.2} parent=19 // pred_region
          %s160 = smul.u32 16, %s18
          %p161 = scmp.lt.s32.totalorder %s17, 1
          %s162 = scalar_select %p161, %s17, 1
          %p163 = scmp.lt.s32.totalorder %s160, 31
          %s164 = scalar_select %p163, %s160, 31
          %s165 = smul.addr %s162, 32
          %s166 = sadd.s32 %s164, %s165
          %s167 = smul.addr %s166, 8
          %s168 = scalar_lea.vmem %s1, %s167
          %s169 = smul.u32 16, %s18
        $region24: #{qga_forward.2} parent=19 // pred_fallthru
          _
        // Predicated region
        $region25: #{qga_forward.2} parent=19 // pred_check
          %p170 = pneg %p93
        $region26: #{qga_forward.2} parent=19 // pred_check_branch
          %172 = sbr.rel (%p170) target = $region28
        $region27: #{qga_forward.2} parent=19 // pred_region
          %s173 = smul.u32 16, %s18
          %p174 = scmp.lt.s32.totalorder %s17, 1
          %s175 = scalar_select %p174, %s17, 1
          %p176 = scmp.lt.s32.totalorder %s173, 31
          %s177 = scalar_select %p176, %s173, 31
          %s178 = smul.addr %s175, 32
          %s179 = sadd.s32 %s177, %s178
          %s180 = smul.addr %s179, 8
          %s181 = scalar_lea.vmem %s2, %s180
          %s182 = smul.u32 16, %s18
        $region28: #{qga_forward.2} parent=19 // pred_fallthru
          _
      $region20: #{qga_forward.2} parent=5 // pred_fallthru
        _
      %p183 = scmp.le.s32.totalorder 1, %s10
      %p184 = scmp.lt.s32.totalorder %s10, 5
      %p185 = pnand %p183, %p184
      %p186 = pneg %p185
      // Predicated region
      $region29: #{qga_forward.2} parent=5 // pred_check
        _
      $region30: #{qga_forward.2} parent=5 // pred_check_branch
        %188 = sbr.rel (%p185) target = $region32
      $region31: #{qga_forward.2} parent=5 // pred_region
        %s189 = ssub.s32 %s10, 1
        // Predicated region
        $region33: #{qga_forward.2} parent=31 // pred_check
          %p190 = pneg %p43
        $region34: #{qga_forward.2} parent=31 // pred_check_branch
          %192 = sbr.rel (%p190) target = $region36
        $region35: #{qga_forward.2} parent=31 // pred_region
          %193 = dma.done [#allocation3], 16
        $region36: #{qga_forward.2} parent=31 // pred_fallthru
          _
        %194 = sfence
        %p195 = pneg %p43
        %p196 = pneg %p40
        %s197 = smul.u32 16, %s20
        %p198 = scmp.lt.s32.totalorder %s19, 1
        %s199 = scalar_select %p198, %s19, 1
        %p200 = scmp.lt.s32.totalorder %s197, 31
        %s201 = scalar_select %p200, %s197, 31
        %s202 = smul.addr %s199, 32
        %s203 = sadd.s32 %s201, %s202
        %s204 = smul.addr %s203, 8
        %s205 = scalar_lea.vmem %s1, %s204
        %p206 = pneg %p71
        %p207 = pneg %p68
        %s208 = smul.u32 16, %s20
        %p209 = scmp.lt.s32.totalorder %s19, 1
        %s210 = scalar_select %p209, %s19, 1
        %p211 = scmp.lt.s32.totalorder %s208, 31
        %s212 = scalar_select %p211, %s208, 31
        %s213 = smul.addr %s210, 32
        %s214 = sadd.s32 %s212, %s213
        %s215 = smul.addr %s214, 8
        %s216 = scalar_lea.vmem %s2, %s215
        %p217 = pneg %p99
        %p218 = pneg %p96
        %p219 = pneg %p127
        %p220 = pneg %p124
        %s221 = smul.u32 16, %s20
        %p222 = scmp.lt.s32.totalorder %s19, 1
        %s223 = scalar_select %p222, %s19, 1
        %p224 = scmp.lt.s32.totalorder %s221, 31
        %s225 = scalar_select %p224, %s221, 31
        %s226 = smul.addr %s223, 32
        %s227 = sadd.s32 %s225, %s226
        %s228 = smul.addr %s227, 8
        %s229 = scalar_lea.vmem %s3, %s228
        %s230 = smul.u32 16, %s20
        %p231 = scmp.lt.s32.totalorder %s19, 1
        %s232 = scalar_select %p231, %s19, 1
        %p233 = scmp.lt.s32.totalorder %s230, 31
        %s234 = scalar_select %p233, %s230, 31
        %s235 = smul.addr %s232, 32
        %s236 = sadd.s32 %s234, %s235
        %s237 = smul.addr %s236, 8
        %s238 = scalar_lea.vmem %s1, %s237
        %s239 = smul.u32 16, %s20
        %s240 = smul.u32 16, %s20
        %p241 = scmp.lt.s32.totalorder %s19, 1
        %s242 = scalar_select %p241, %s19, 1
        %p243 = scmp.lt.s32.totalorder %s240, 31
        %s244 = scalar_select %p243, %s240, 31
        %s245 = smul.addr %s242, 32
        %s246 = sadd.s32 %s244, %s245
        %s247 = smul.addr %s246, 8
        %s248 = scalar_lea.vmem %s2, %s247
        %s249 = smul.u32 16, %s20
        %s250 = smul.u32 16, %s20
        %p251 = scmp.lt.s32.totalorder %s19, 1
        %s252 = scalar_select %p251, %s19, 1
        %p253 = scmp.lt.s32.totalorder %s250, 31
        %s254 = scalar_select %p253, %s250, 31
        %s255 = smul.addr %s252, 32
        %s256 = sadd.s32 %s254, %s255
        %s257 = smul.addr %s256, 8
        %s258 = scalar_lea.vmem %s3, %s257
        %s259 = smul.u32 16, %s20
        %s260 = smul.u32 %s19, 2
        %v261 = vld [vmem:[%s238] sm:$0xff]
        %v262 = vld [vmem:[%s238 + $0x8] sm:$0xff]
        %v263 = vld [vmem:[%s238 + $0x10] sm:$0xff]
        %v264 = vld [vmem:[%s238 + $0x18] sm:$0xff]
        %v265 = vld [vmem:[%s238 + $0x20] sm:$0xff]
        %v266 = vld [vmem:[%s238 + $0x28] sm:$0xff]
        %v267 = vld [vmem:[%s238 + $0x30] sm:$0xff]
        %v268 = vld [vmem:[%s238 + $0x38] sm:$0xff]
        %v269 = vld [vmem:[%s238 + $0x40] sm:$0xff]
        %v270 = vld [vmem:[%s238 + $0x48] sm:$0xff]
        %v271 = vld [vmem:[%s238 + $0x50] sm:$0xff]
        %v272 = vld [vmem:[%s238 + $0x58] sm:$0xff]
        %v273 = vld [vmem:[%s238 + $0x60] sm:$0xff]
        %v274 = vld [vmem:[%s238 + $0x68] sm:$0xff]
        %v275 = vld [vmem:[%s238 + $0x70] sm:$0xff]
        %v276 = vld [vmem:[%s238 + $0x78] sm:$0xff]
        %s277 = sld [smem:[#allocation2 + %s260]]
        %v278 = vstv %s277
        %v279 = vmul.f32 %v261, %v278
        %v280 = vmul.f32 %v262, %v278
        %v281 = vmul.f32 %v263, %v278
        %v282 = vmul.f32 %v264, %v278
        %v283 = vmul.f32 %v265, %v278
        %v284 = vmul.f32 %v266, %v278
        %v285 = vmul.f32 %v267, %v278
        %v286 = vmul.f32 %v268, %v278
        %v287 = vmul.f32 %v269, %v278
        %v288 = vmul.f32 %v270, %v278
        %v289 = vmul.f32 %v271, %v278
        %v290 = vmul.f32 %v272, %v278
        %v291 = vmul.f32 %v273, %v278
        %v292 = vmul.f32 %v274, %v278
        %v293 = vmul.f32 %v275, %v278
        %v294 = vmul.f32 %v276, %v278
        %v295 = vld [vmem:[%s248] sm:$0xff]
        %v296 = vld [vmem:[%s248 + $0x8] sm:$0xff]
        %v297 = vld [vmem:[%s248 + $0x10] sm:$0xff]
        %v298 = vld [vmem:[%s248 + $0x18] sm:$0xff]
        %v299 = vld [vmem:[%s248 + $0x20] sm:$0xff]
        %v300 = vld [vmem:[%s248 + $0x28] sm:$0xff]
        %v301 = vld [vmem:[%s248 + $0x30] sm:$0xff]
        %v302 = vld [vmem:[%s248 + $0x38] sm:$0xff]
        %v303 = vld [vmem:[%s248 + $0x40] sm:$0xff]
        %v304 = vld [vmem:[%s248 + $0x48] sm:$0xff]
        %v305 = vld [vmem:[%s248 + $0x50] sm:$0xff]
        %v306 = vld [vmem:[%s248 + $0x58] sm:$0xff]
        %v307 = vld [vmem:[%s248 + $0x60] sm:$0xff]
        %v308 = vld [vmem:[%s248 + $0x68] sm:$0xff]
        %v309 = vld [vmem:[%s248 + $0x70] sm:$0xff]
        %v310 = vld [vmem:[%s248 + $0x78] sm:$0xff]
        %s311 = sadd.s32 %s260, 1
        %s312 = sld [smem:[#allocation2 + %s311]]
        %v313 = vstv %s312
        %v314 = vmul.f32 %v295, %v313
        %v315 = vmul.f32 %v296, %v313
        %v316 = vmul.f32 %v297, %v313
        %v317 = vmul.f32 %v298, %v313
        %v318 = vmul.f32 %v299, %v313
        %v319 = vmul.f32 %v300, %v313
        %v320 = vmul.f32 %v301, %v313
        %v321 = vmul.f32 %v302, %v313
        %v322 = vmul.f32 %v303, %v313
        %v323 = vmul.f32 %v304, %v313
        %v324 = vmul.f32 %v305, %v313
        %v325 = vmul.f32 %v306, %v313
        %v326 = vmul.f32 %v307, %v313
        %v327 = vmul.f32 %v308, %v313
        %v328 = vmul.f32 %v309, %v313
        %v329 = vmul.f32 %v310, %v313
        %v330 = vadd.f32 %v279, %v314
        %v331 = vadd.f32 %v280, %v315
        %v332 = vadd.f32 %v281, %v316
        %v333 = vadd.f32 %v282, %v317
        %v334 = vadd.f32 %v283, %v318
        %v335 = vadd.f32 %v284, %v319
        %v336 = vadd.f32 %v285, %v320
        %v337 = vadd.f32 %v286, %v321
        %v338 = vadd.f32 %v287, %v322
        %v339 = vadd.f32 %v288, %v323
        %v340 = vadd.f32 %v289, %v324
        %v341 = vadd.f32 %v290, %v325
        %v342 = vadd.f32 %v291, %v326
        %v343 = vadd.f32 %v292, %v327
        %v344 = vadd.f32 %v293, %v328
        %v345 = vadd.f32 %v294, %v329
        %346 = vst [vmem:[%s258] sm:$0xff] %v330
        %347 = vst [vmem:[%s258 + $0x8] sm:$0xff] %v331
        %348 = vst [vmem:[%s258 + $0x10] sm:$0xff] %v332
        %349 = vst [vmem:[%s258 + $0x18] sm:$0xff] %v333
        %350 = vst [vmem:[%s258 + $0x20] sm:$0xff] %v334
        %351 = vst [vmem:[%s258 + $0x28] sm:$0xff] %v335
        %352 = vst [vmem:[%s258 + $0x30] sm:$0xff] %v336
        %353 = vst [vmem:[%s258 + $0x38] sm:$0xff] %v337
        %354 = vst [vmem:[%s258 + $0x40] sm:$0xff] %v338
        %355 = vst [vmem:[%s258 + $0x48] sm:$0xff] %v339
        %356 = vst [vmem:[%s258 + $0x50] sm:$0xff] %v340
        %357 = vst [vmem:[%s258 + $0x58] sm:$0xff] %v341
        %358 = vst [vmem:[%s258 + $0x60] sm:$0xff] %v342
        %359 = vst [vmem:[%s258 + $0x68] sm:$0xff] %v343
        %360 = vst [vmem:[%s258 + $0x70] sm:$0xff] %v344
        %361 = vst [vmem:[%s258 + $0x78] sm:$0xff] %v345
        %s362 = smul.u32 16, %s20
        %p363 = scmp.lt.s32.totalorder %s19, 1
        %s364 = scalar_select %p363, %s19, 1
        %p365 = scmp.lt.s32.totalorder %s362, 31
        %s366 = scalar_select %p365, %s362, 31
        %s367 = smul.addr %s364, 32
        %s368 = sadd.s32 %s366, %s367
        %s369 = smul.addr %s368, 8
        %s370 = scalar_lea.vmem %s3, %s369
        // Predicated region
        $region37: #{qga_forward.2} parent=31 // pred_check
          %p371 = pneg %p124
        $region38: #{qga_forward.2} parent=31 // pred_check_branch
          %373 = sbr.rel (%p371) target = $region40
        $region39: #{qga_forward.2} parent=31 // pred_region
          %s374 = smul.u32 16, %s20
        $region40: #{qga_forward.2} parent=31 // pred_fallthru
          _
      $region32: #{qga_forward.2} parent=5 // pred_fallthru
        _
      %p375 = scmp.le.s32.totalorder 2, %s10
      // Predicated region
      $region41: #{qga_forward.2} parent=5 // pred_check
        %p376 = pneg %p375
      $region42: #{qga_forward.2} parent=5 // pred_check_branch
        %378 = sbr.rel (%p376) target = $region44
      $region43: #{qga_forward.2} parent=5 // pred_region
        %s379 = ssub.s32 %s10, 2
        // Predicated region
        $region45: #{qga_forward.2} parent=43 // pred_check
          %p380 = pneg %p130
        $region46: #{qga_forward.2} parent=43 // pred_check_branch
          %382 = sbr.rel (%p380) target = $region48
        $region47: #{qga_forward.2} parent=43 // pred_region
          %s383 = smul.u32 16, %s22
          %p384 = scmp.lt.s32.totalorder %s21, 1
          %s385 = scalar_select %p384, %s21, 1
          %p386 = scmp.lt.s32.totalorder %s383, 31
          %s387 = scalar_select %p386, %s383, 31
          %s388 = smul.addr %s385, 32
          %s389 = sadd.s32 %s387, %s388
          %s390 = smul.addr %s389, 8
          %s391 = scalar_lea.vmem %s3, %s390
        $region48: #{qga_forward.2} parent=43 // pred_fallthru
          _
      $region44: #{qga_forward.2} parent=5 // pred_fallthru
        _
    $region6: #{qga_forward.2} parent=1 // loop_footer
      %s14 = sadd.s32 1, %s10
    $region7: #{qga_forward.2} parent=1 // loop_footer_branch
      %9 = sbr.rel target = $region3
    $region8: #{qga_forward.2} parent=1 // loop_exit
      _
    %392 = vsyncpa [#allocation3], 1
    %s393 = scalar_lea.sflag [#allocation3], 1
    %394 = vsyncpa %s393, 1

</llo_original>
